<compile_context>
chip_gen: v5e
topology: v5e:2x2
jax: 0.10.0
libtpu: 0.0.40
codegen_flags: <defaults>
</compile_context>

<pallas_src>
import functools

import jax
import jax.numpy as jnp
from jax.experimental import pallas as pl
from jax.experimental.pallas import tpu as pltpu

_LN_EPS = 1e-5  # nn.LayerNorm default eps


def _erf_approx(z):
    # Abramowitz & Stegun 7.1.26, |err| <= 1.5e-7 in f32.
    a1, a2, a3, a4, a5 = (0.254829592, -0.284496736, 1.421413741,
                          -1.453152027, 1.061405429)
    pc = 0.3275911
    az = jnp.abs(z)
    t = 1.0 / (1.0 + pc * az)
    poly = ((((a5 * t + a4) * t + a3) * t + a2) * t + a1) * t
    pos = 1.0 - poly * jnp.exp(-az * az)
    return jnp.where(z >= 0.0, pos, -pos)


def _gelu_exact(x):
    # PyTorch default F.gelu (erf form).
    return 0.5 * x * (1.0 + _erf_approx(x * 0.7071067811865476))


def _act_drop_norm_kernel(seed_ref, x_ref, gamma_ref, beta_ref, o_ref, *, dropout_p):
    # x_ref block: (n_feats, TILE_T) — features on sublanes, time on lanes.
    x = x_ref[...].astype(jnp.float32)

    # LayerNorm over the feature (sublane) axis; biased variance like nn.LayerNorm.
    mean = jnp.mean(x, axis=0, keepdims=True)            # (1, TILE_T)
    xc = x - mean
    var = jnp.mean(xc * xc, axis=0, keepdims=True)
    y = xc * jax.lax.rsqrt(var + _LN_EPS)
    y = y * gamma_ref[...] + beta_ref[...]               # (F, 1) broadcasts along lanes

    g = _gelu_exact(y)

    if dropout_p > 0.0:
        p = float(dropout_p)
        thr = min(int(round(p * 4294967296.0)), 0xFFFFFFFF)   # keep iff hash >= thr
        inv_keep = 0.0 if p >= 1.0 else 1.0 / (1.0 - p)       # p==1 -> all zeros (no 1/0)

        # Per-tile seed, linearized over the full 2-D grid (no stream reuse across tiles).
        tile_id = pl.program_id(0) * pl.num_programs(1) + pl.program_id(1)
        base = (seed_ref[0] + tile_id * jnp.int32(262153)).astype(jnp.uint32)

        # Counter-based hash (adds/xors/shifts only — no vector multiplies, no HW PRNG).
        f_idx = jax.lax.broadcasted_iota(jnp.uint32, g.shape, 0)
        t_idx = jax.lax.broadcasted_iota(jnp.uint32, g.shape, 1)
        t_bits = max((g.shape[1] - 1).bit_length(), 0)
        h = ((f_idx << t_bits) + t_idx) ^ base
        h = h + (h << 10)
        h = h ^ (h >> 6)
        h = h + (h << 3)
        h = h ^ (h >> 11)
        h = h + (h << 15)
        h = h ^ (h >> 16)

        keep = h >= jnp.uint32(thr)
        g = jnp.where(keep, g * jnp.float32(inv_keep), jnp.float32(0.0))

    o_ref[...] = g.astype(o_ref.dtype)


def _pick_tile_t(T, F):
    if T <= 512:
        return T                       # full extent — always a legal block
    # TILE_T multiple of 128, one f32 (F, TILE_T) buffer <= ~4 MiB (v7x VMEM budget).
    budget = (1 << 20) // max(F, 1)    # elements along T for 4 MiB of f32
    return max(128, min(512, (budget // 128) * 128))


def act_drop_norm_cnn1d(x, gamma, beta, seed, *, dropout_p, keep_shape=False):
    """x: (B, n_feats, T) float32 — same NCL layout the PyTorch module receives."""
    B, F, T = x.shape
    tile_t = _pick_tile_t(T, F)
    n_t = pl.cdiv(T, tile_t)

    gamma2 = jnp.asarray(gamma, jnp.float32).reshape(F, 1)
    beta2 = jnp.asarray(beta, jnp.float32).reshape(F, 1)
    seed_arr = jnp.asarray([seed], dtype=jnp.int32)

    out_ncl = pl.pallas_call(
        functools.partial(_act_drop_norm_kernel, dropout_p=float(dropout_p)),
        out_shape=jax.ShapeDtypeStruct((B, F, T), x.dtype),
        grid=(B, n_t),
        in_specs=[
            pl.BlockSpec(memory_space=pltpu.MemorySpace.SMEM),        # seed scalar
            pl.BlockSpec((None, F, tile_t), lambda b, t: (b, 0, t)),  # x tile (F, tile_t)
            pl.BlockSpec((F, 1), lambda b, t: (0, 0)),                # gamma
            pl.BlockSpec((F, 1), lambda b, t: (0, 0)),                # beta
        ],
        out_specs=pl.BlockSpec((None, F, tile_t), lambda b, t: (b, 0, t)),
        compiler_params=pltpu.CompilerParams(
            dimension_semantics=("parallel", "parallel")),
    )(seed_arr, x, gamma2, beta2)

    if keep_shape:
        return out_ncl                               # (B, n_feats, T): zero transposes
    # Module semantics: default output is (B, T, n_feats).  One XLA relayout pass.
    return jnp.transpose(out_ncl, (0, 2, 1))


def _reference_no_dropout(x, gamma, beta, keep_shape=False):
    """Pure-JAX reference of the forward with dropout disabled (eval-mode)."""
    xt = jnp.transpose(x, (0, 2, 1))
    mean = jnp.mean(xt, axis=-1, keepdims=True)
    var = jnp.mean((xt - mean) ** 2, axis=-1, keepdims=True)
    y = (xt - mean) * jax.lax.rsqrt(var + _LN_EPS) * gamma + beta
    y = jax.nn.gelu(y, approximate=False)
    if keep_shape:
        y = jnp.transpose(y, (0, 2, 1))
    return y


if __name__ == "__main__":
    B, n_feats, T = 2, 32, 16
    dropout = 0.2

    key = jax.random.PRNGKey(0)
    x = jax.random.normal(key, (B, n_feats, T), dtype=jnp.float32)
    # nn.LayerNorm default init: weight = ones, bias = zeros (deterministic)
    gamma = jnp.ones((n_feats,), dtype=jnp.float32)
    beta = jnp.zeros((n_feats,), dtype=jnp.float32)

    # Correctness of the LayerNorm + GELU hot path (dropout p=0 => identity mask).
    out_p0 = act_drop_norm_cnn1d(x, gamma, beta, seed=0, dropout_p=0.0)
    ref_p0 = _reference_no_dropout(x, gamma, beta)
    assert out_p0.shape == (B, T, n_feats)
    assert jnp.allclose(out_p0, ref_p0, rtol=1e-5, atol=1e-5), "mismatch vs reference"

    # Training-mode forward (dropout active), both keep_shape variants.
    out = act_drop_norm_cnn1d(x, gamma, beta, seed=123, dropout_p=dropout,
                              keep_shape=False)
    out_keep = act_drop_norm_cnn1d(x, gamma, beta, seed=123, dropout_p=dropout,
                                   keep_shape=True)
    jax.block_until_ready((out, out_keep))

    assert out.shape == (B, T, n_feats)
    assert out_keep.shape == (B, n_feats, T)
    assert bool(jnp.all(jnp.isfinite(out)))
    # Loose sanity check that dropout drops something but not (nearly) everything.
    nz = int(jnp.sum(out == 0.0))
    assert 0 < nz < 0.5 * out.size, f"dropout mask looks wrong: {nz}/{out.size} zeros"

    print("KERNEL_OK")
</pallas_src>

<mosaic_0001>
module attributes {stable_mosaic.version = 11 : i64} {
  func.func @_act_drop_norm_kernel(%arg0: i32, %arg1: i32, %arg2: memref<1xi32, #tpu.memory_space<smem>>, %arg3: memref<1x32x16xf32, #tpu.memory_space<vmem>>, %arg4: memref<32x1xf32, #tpu.memory_space<vmem>>, %arg5: memref<32x1xf32, #tpu.memory_space<vmem>>, %arg6: memref<1x32x16xf32, #tpu.memory_space<vmem>>) attributes {dimension_semantics = [#tpu.dimension_semantics<parallel>, #tpu.dimension_semantics<parallel>], iteration_bounds = array<i64: 2, 1>, scalar_prefetch = 0 : i64, scratch_operands = 0 : i64, tpu.core_type = #tpu.core_type<tc>, window_params = [{transform_indices = @transform_0, window_bounds = array<i64: 1>}, {transform_indices = @transform_1, window_bounds = array<i64: 1, 32, 16>}, {pipeline_mode = #tpu.pipeline_mode<synchronous>, transform_indices = @transform_2, window_bounds = array<i64: 32, 1>}, {pipeline_mode = #tpu.pipeline_mode<synchronous>, transform_indices = @transform_3, window_bounds = array<i64: 32, 1>}, {transform_indices = @transform_4, window_bounds = array<i64: 1, 32, 16>}]} {
    %c0 = arith.constant 0 : index
    %c0_0 = arith.constant 0 : index
    %c0_1 = arith.constant 0 : index
    %0 = vector.load %arg3[%c0, %c0_0, %c0_1] : memref<1x32x16xf32, #tpu.memory_space<vmem>>, vector<1x32x16xf32>
    %1 = vector.shape_cast %0 : vector<1x32x16xf32> to vector<32x16xf32>
    %cst = arith.constant dense<0.000000e+00> : vector<16xf32>
    %2 = vector.multi_reduction <add>, %1, %cst [0] : vector<32x16xf32> to vector<16xf32>
    %3 = vector.shape_cast %2 : vector<16xf32> to vector<1x16xf32>
    %cst_2 = arith.constant 3.200000e+01 : f32
    %4 = vector.broadcast %cst_2 : f32 to vector<1x16xf32>
    %5 = arith.divf %3, %4 : vector<1x16xf32>
    %6 = vector.broadcast %5 : vector<1x16xf32> to vector<32x16xf32>
    %7 = arith.subf %1, %6 : vector<32x16xf32>
    %8 = arith.mulf %7, %7 : vector<32x16xf32>
    %cst_3 = arith.constant dense<0.000000e+00> : vector<16xf32>
    %9 = vector.multi_reduction <add>, %8, %cst_3 [0] : vector<32x16xf32> to vector<16xf32>
    %10 = vector.shape_cast %9 : vector<16xf32> to vector<1x16xf32>
    %cst_4 = arith.constant 3.200000e+01 : f32
    %11 = vector.broadcast %cst_4 : f32 to vector<1x16xf32>
    %12 = arith.divf %10, %11 : vector<1x16xf32>
    %cst_5 = arith.constant 9.99999974E-6 : f32
    %13 = vector.broadcast %cst_5 : f32 to vector<1x16xf32>
    %14 = arith.addf %12, %13 : vector<1x16xf32>
    %15 = math.rsqrt %14 : vector<1x16xf32>
    %16 = vector.broadcast %15 : vector<1x16xf32> to vector<32x16xf32>
    %17 = arith.mulf %7, %16 : vector<32x16xf32>
    %c0_6 = arith.constant 0 : index
    %c0_7 = arith.constant 0 : index
    %18 = vector.load %arg4[%c0_6, %c0_7] : memref<32x1xf32, #tpu.memory_space<vmem>>, vector<32x1xf32>
    %19 = vector.broadcast %18 : vector<32x1xf32> to vector<32x16xf32>
    %20 = arith.mulf %17, %19 : vector<32x16xf32>
    %c0_8 = arith.constant 0 : index
    %c0_9 = arith.constant 0 : index
    %21 = vector.load %arg5[%c0_8, %c0_9] : memref<32x1xf32, #tpu.memory_space<vmem>>, vector<32x1xf32>
    %22 = vector.broadcast %21 : vector<32x1xf32> to vector<32x16xf32>
    %23 = arith.addf %20, %22 : vector<32x16xf32>
    %cst_10 = arith.constant 5.000000e-01 : f32
    %24 = vector.broadcast %cst_10 : f32 to vector<32x16xf32>
    %25 = arith.mulf %24, %23 : vector<32x16xf32>
    %cst_11 = arith.constant 0.707106769 : f32
    %26 = vector.broadcast %cst_11 : f32 to vector<32x16xf32>
    %27 = arith.mulf %23, %26 : vector<32x16xf32>
    %28 = math.absf %27 : vector<32x16xf32>
    %cst_12 = arith.constant 0.327591091 : f32
    %29 = vector.broadcast %cst_12 : f32 to vector<32x16xf32>
    %30 = arith.mulf %29, %28 : vector<32x16xf32>
    %cst_13 = arith.constant 1.000000e+00 : f32
    %31 = vector.broadcast %cst_13 : f32 to vector<32x16xf32>
    %32 = arith.addf %31, %30 : vector<32x16xf32>
    %cst_14 = arith.constant 1.000000e+00 : f32
    %33 = vector.broadcast %cst_14 : f32 to vector<32x16xf32>
    %34 = arith.divf %33, %32 : vector<32x16xf32>
    %cst_15 = arith.constant 1.06140542 : f32
    %35 = vector.broadcast %cst_15 : f32 to vector<32x16xf32>
    %36 = arith.mulf %35, %34 : vector<32x16xf32>
    %cst_16 = arith.constant -1.45315206 : f32
    %37 = vector.broadcast %cst_16 : f32 to vector<32x16xf32>
    %38 = arith.addf %36, %37 : vector<32x16xf32>
    %39 = arith.mulf %38, %34 : vector<32x16xf32>
    %cst_17 = arith.constant 1.42141378 : f32
    %40 = vector.broadcast %cst_17 : f32 to vector<32x16xf32>
    %41 = arith.addf %39, %40 : vector<32x16xf32>
    %42 = arith.mulf %41, %34 : vector<32x16xf32>
    %cst_18 = arith.constant -0.284496725 : f32
    %43 = vector.broadcast %cst_18 : f32 to vector<32x16xf32>
    %44 = arith.addf %42, %43 : vector<32x16xf32>
    %45 = arith.mulf %44, %34 : vector<32x16xf32>
    %cst_19 = arith.constant 0.254829586 : f32
    %46 = vector.broadcast %cst_19 : f32 to vector<32x16xf32>
    %47 = arith.addf %45, %46 : vector<32x16xf32>
    %48 = arith.mulf %47, %34 : vector<32x16xf32>
    %cst_20 = arith.constant 0.000000e+00 : f32
    %49 = vector.broadcast %cst_20 : f32 to vector<32x16xf32>
    %50 = arith.subf %49, %28 : vector<32x16xf32>
    %51 = arith.mulf %50, %28 : vector<32x16xf32>
    %52 = math.exp %51 : vector<32x16xf32>
    %53 = arith.mulf %48, %52 : vector<32x16xf32>
    %cst_21 = arith.constant 1.000000e+00 : f32
    %54 = vector.broadcast %cst_21 : f32 to vector<32x16xf32>
    %55 = arith.subf %54, %53 : vector<32x16xf32>
    %cst_22 = arith.constant 0.000000e+00 : f32
    %56 = vector.broadcast %cst_22 : f32 to vector<32x16xf32>
    %57 = arith.cmpf oge, %27, %56 : vector<32x16xf32>
    %cst_23 = arith.constant 0.000000e+00 : f32
    %58 = vector.broadcast %cst_23 : f32 to vector<32x16xf32>
    %59 = arith.subf %58, %55 : vector<32x16xf32>
    %60 = arith.select %57, %55, %59 : vector<32x16xi1>, vector<32x16xf32>
    %cst_24 = arith.constant 1.000000e+00 : f32
    %61 = vector.broadcast %cst_24 : f32 to vector<32x16xf32>
    %62 = arith.addf %61, %60 : vector<32x16xf32>
    %63 = arith.mulf %25, %62 : vector<32x16xf32>
    %c0_25 = arith.constant 0 : index
    %c0_26 = arith.constant 0 : index
    %c0_27 = arith.constant 0 : index
    %64 = vector.load %arg6[%c0_25, %c0_26, %c0_27] : memref<1x32x16xf32, #tpu.memory_space<vmem>>, vector<1x32x16xf32>
    %65 = vector.shape_cast %64 : vector<1x32x16xf32> to vector<32x16xf32>
    %66 = vector.shape_cast %63 : vector<32x16xf32> to vector<1x32x16xf32>
    tpu.vector_store %arg6[%c0_25, %c0_26, %c0_27], %66 {strides = array<i32>} : memref<1x32x16xf32, #tpu.memory_space<vmem>>, vector<1x32x16xf32>,
    return
  }
  func.func @transform_0(%arg0: i32, %arg1: i32) -> i32 {
    %c0_i32 = arith.constant 0 : i32
    %c0_i32_0 = arith.constant 0 : i32
    return %c0_i32 : i32
  }
  func.func @transform_1(%arg0: i32, %arg1: i32) -> (i32, i32, i32) {
    %c0_i32 = arith.constant 0 : i32
    %c0_i32_0 = arith.constant 0 : i32
    return %arg0, %c0_i32, %arg1 : i32, i32, i32
  }
  func.func @transform_2(%arg0: i32, %arg1: i32) -> (i32, i32) {
    %c0_i32 = arith.constant 0 : i32
    %c0_i32_0 = arith.constant 0 : i32
    %c0_i32_1 = arith.constant 0 : i32
    return %c0_i32, %c0_i32_0 : i32, i32
  }
  func.func @transform_3(%arg0: i32, %arg1: i32) -> (i32, i32) {
    %c0_i32 = arith.constant 0 : i32
    %c0_i32_0 = arith.constant 0 : i32
    %c0_i32_1 = arith.constant 0 : i32
    return %c0_i32, %c0_i32_0 : i32, i32
  }
  func.func @transform_4(%arg0: i32, %arg1: i32) -> (i32, i32, i32) {
    %c0_i32 = arith.constant 0 : i32
    %c0_i32_0 = arith.constant 0 : i32
    return %arg0, %c0_i32, %arg1 : i32, i32, i32
  }
}

</mosaic_0001>

<llo_original>
// kernel: tpu_custom_call.1
$region0: #{tpu_custom_call.1}
  #allocation0 [shape = 'u32[]', space=smem, size = 0x4, offset = 0x4, fixed_abs, tag = 'smem constant byte address 0x4 - core index']
  #allocation1 [shape = 'u32[72,128]{1,0:T(1,128)}', space=vmem, size = 0x9000, scoped, tag = 'internal scratch']
  #allocation2 [shape = 's32[1]{0:T(128)S(6)}', space=smem, size = 0x200, scoped, tag = 'scoped memory for tpu_custom_call.1']
  %s0 = inlined_call_operand.<no memory space> [shape: s32[1], index: 0, kind: input, shape index: {}]
  %s1 = inlined_call_operand.vmem [shape: f32[2,32,16], index: 1, kind: input, shape index: {}]
  %s2 = inlined_call_operand.vmem [shape: f32[32,1], index: 2, kind: input, shape index: {}]
  %s3 = inlined_call_operand.vmem [shape: f32[32,1], index: 3, kind: input, shape index: {}]
  %s4 = inlined_call_operand.vmem [shape: f32[2,32,16], index: 4, kind: output, shape index: {}]
  %s5 = sld [smem:[#allocation0]]
  $region49: #{tpu_custom_call.1} parent=0
    _
  %s7 = ssub.s32 1, %s5
  %s8 = scalar_select 0, %s7, %s5
  %9 = sst [smem:[#allocation2]] %s0
  loop: start=0, step=1, limit=4
  $region2: #{tpu_custom_call.1} parent=0 // loop_pre_header
    _
  $region3: #{tpu_custom_call.1} parent=0 // loop_header
    %s11 = sphi 0, %s15
    %p12 = scmp.ge.s32.totalorder %s11, 4
    %s18 = sphi 0, %s30
    %s19 = sphi 0, %s26
    %s20 = sphi 0, %s18
    %s21 = sphi 0, %s19
    %s22 = sphi 0, %s20
    %s23 = sphi 0, %s21
    %s31 = sphi 0, %s31
    %s33 = sphi 0, %s31
    %s34 = sphi 0, %s33
    %s48 = sphi 0, %s34
    %s56 = sphi 0, %s58
    %s59 = sphi 0, %s56
    %s60 = sphi 0, %s59
    %s76 = sphi 0, %s60
    %s80 = sphi 0, %s80
    %s82 = sphi 0, %s80
    %s83 = sphi 0, %s82
    %s97 = sphi 0, %s83
    %s101 = sphi 0, %s101
    %s103 = sphi 0, %s101
    %s104 = sphi 0, %s103
    %s118 = sphi 0, %s104
    %s126 = sphi 0, %s128
    %s129 = sphi 0, %s126
    %s130 = sphi 0, %s129
    %s146 = sphi 0, %s130
  $region4: #{tpu_custom_call.1} parent=0 // loop_header_branch
    %14 = sbr.rel (%p12) target = $region8
  $region5: #{tpu_custom_call.1} parent=0 // loop_body
    %s16 = ssub.s32 %s11, 1
    %s17 = ssub.s32 %s11, 2
    %s24 = sadd.s32 1, %s19
    %p25 = scmp.ge.s32.totalorder %s24, 1
    %s26 = scalar_select %p25, 0, %s24
    %s27 = sadd.s32 1, %s18
    %s28 = scalar_select %p25, %s27, %s18
    %p29 = scmp.ge.s32.totalorder %s28, 2
    %s30 = scalar_select %p29, 0, %s28
    %s32 = sadd.s32 %s31, 1
    %p35 = scmp.eq.s32.totalorder %s11, 1
    %p36 = scmp.ne.s32.totalorder %s31, %s33
    %p37 = scmp.eq.s32.totalorder %s11, 0
    %p38 = por %p36, %p37
    %p39 = scmp.ne.s32.totalorder %s31, %s33
    %p40 = scmp.eq.s32.totalorder %s16, 1
    %p41 = por %p39, %p40
    %p42 = scmp.ne.s32.totalorder %s33, %s34
    %p43 = scmp.eq.s32.totalorder %s16, 0
    %p44 = por %p42, %p43
    %p45 = scmp.ne.s32.totalorder %s33, %s34
    %p46 = scmp.eq.s32.totalorder %s17, 1
    %p47 = por %p45, %p46
    %p49 = scmp.ne.s32.totalorder %s34, %s48
    %p50 = scmp.eq.s32.totalorder %s17, 0
    %p51 = por %p49, %p50
    %s52 = ssub.s32 %s18, %s30
    %s53 = ssub.s32 %s19, %s26
    %s54 = sor.u32 %s52, %s53
    %p55 = scmp.eq.s32.totalorder %s54, 0
    %s57 = sadd.s32 %s56, 1
    %s58 = scalar_select %p55, %s56, %s57
    %p61 = pneg %p55
    %p62 = scmp.eq.s32.totalorder %s11, 1
    %p63 = por %p61, %p62
    %p64 = scmp.ne.s32.totalorder %s56, %s59
    %p65 = scmp.eq.s32.totalorder %s11, 0
    %p66 = por %p64, %p65
    %p67 = scmp.ne.s32.totalorder %s56, %s59
    %p68 = scmp.eq.s32.totalorder %s16, 1
    %p69 = por %p67, %p68
    %p70 = scmp.ne.s32.totalorder %s59, %s60
    %p71 = scmp.eq.s32.totalorder %s16, 0
    %p72 = por %p70, %p71
    %p73 = scmp.ne.s32.totalorder %s59, %s60
    %p74 = scmp.eq.s32.totalorder %s17, 1
    %p75 = por %p73, %p74
    %p77 = scmp.ne.s32.totalorder %s60, %s76
    %p78 = scmp.eq.s32.totalorder %s17, 0
    %p79 = por %p77, %p78
    %s81 = sadd.s32 %s80, 1
    %p84 = scmp.eq.s32.totalorder %s11, 1
    %p85 = scmp.ne.s32.totalorder %s80, %s82
    %p86 = scmp.eq.s32.totalorder %s11, 0
    %p87 = por %p85, %p86
    %p88 = scmp.ne.s32.totalorder %s80, %s82
    %p89 = scmp.eq.s32.totalorder %s16, 1
    %p90 = por %p88, %p89
    %p91 = scmp.ne.s32.totalorder %s82, %s83
    %p92 = scmp.eq.s32.totalorder %s16, 0
    %p93 = por %p91, %p92
    %p94 = scmp.ne.s32.totalorder %s82, %s83
    %p95 = scmp.eq.s32.totalorder %s17, 1
    %p96 = por %p94, %p95
    %p98 = scmp.ne.s32.totalorder %s83, %s97
    %p99 = scmp.eq.s32.totalorder %s17, 0
    %p100 = por %p98, %p99
    %s102 = sadd.s32 %s101, 1
    %p105 = scmp.eq.s32.totalorder %s11, 1
    %p106 = scmp.ne.s32.totalorder %s101, %s103
    %p107 = scmp.eq.s32.totalorder %s11, 0
    %p108 = por %p106, %p107
    %p109 = scmp.ne.s32.totalorder %s101, %s103
    %p110 = scmp.eq.s32.totalorder %s16, 1
    %p111 = por %p109, %p110
    %p112 = scmp.ne.s32.totalorder %s103, %s104
    %p113 = scmp.eq.s32.totalorder %s16, 0
    %p114 = por %p112, %p113
    %p115 = scmp.ne.s32.totalorder %s103, %s104
    %p116 = scmp.eq.s32.totalorder %s17, 1
    %p117 = por %p115, %p116
    %p119 = scmp.ne.s32.totalorder %s104, %s118
    %p120 = scmp.eq.s32.totalorder %s17, 0
    %p121 = por %p119, %p120
    %s122 = ssub.s32 %s18, %s30
    %s123 = ssub.s32 %s19, %s26
    %s124 = sor.u32 %s122, %s123
    %p125 = scmp.eq.s32.totalorder %s124, 0
    %s127 = sadd.s32 %s126, 1
    %s128 = scalar_select %p125, %s126, %s127
    %p131 = pneg %p125
    %p132 = scmp.eq.s32.totalorder %s11, 1
    %p133 = por %p131, %p132
    %p134 = scmp.ne.s32.totalorder %s126, %s129
    %p135 = scmp.eq.s32.totalorder %s11, 0
    %p136 = por %p134, %p135
    %p137 = scmp.ne.s32.totalorder %s126, %s129
    %p138 = scmp.eq.s32.totalorder %s16, 1
    %p139 = por %p137, %p138
    %p140 = scmp.ne.s32.totalorder %s129, %s130
    %p141 = scmp.eq.s32.totalorder %s16, 0
    %p142 = por %p140, %p141
    %p143 = scmp.ne.s32.totalorder %s129, %s130
    %p144 = scmp.eq.s32.totalorder %s17, 1
    %p145 = por %p143, %p144
    %p147 = scmp.ne.s32.totalorder %s130, %s146
    %p148 = scmp.eq.s32.totalorder %s17, 0
    %p149 = por %p147, %p148
    %p150 = scmp.le.s32.totalorder 1, %s11
    %p151 = scmp.lt.s32.totalorder %s11, 3
    %p152 = pnand %p150, %p151
    %p153 = pneg %p152
    // Predicated region
    $region9: #{tpu_custom_call.1} parent=5 // pred_check
      _
    $region10: #{tpu_custom_call.1} parent=5 // pred_check_branch
      %155 = sbr.rel (%p152) target = $region12
    $region11: #{tpu_custom_call.1} parent=5 // pred_region
      %s156 = ssub.s32 %s11, 1
      // Predicated region
      $region13: #{tpu_custom_call.1} parent=11 // pred_check
        %p157 = pneg %p44
      $region14: #{tpu_custom_call.1} parent=11 // pred_check_branch
        %159 = sbr.rel (%p157) target = $region16
      $region15: #{tpu_custom_call.1} parent=11 // pred_region
        _
      $region16: #{tpu_custom_call.1} parent=11 // pred_fallthru
        _
      // Predicated region
      $region17: #{tpu_custom_call.1} parent=11 // pred_check
        %p160 = pneg %p93
      $region18: #{tpu_custom_call.1} parent=11 // pred_check_branch
        %162 = sbr.rel (%p160) target = $region20
      $region19: #{tpu_custom_call.1} parent=11 // pred_region
        _
      $region20: #{tpu_custom_call.1} parent=11 // pred_fallthru
        _
      // Predicated region
      $region21: #{tpu_custom_call.1} parent=11 // pred_check
        %p163 = pneg %p114
      $region22: #{tpu_custom_call.1} parent=11 // pred_check_branch
        %165 = sbr.rel (%p163) target = $region24
      $region23: #{tpu_custom_call.1} parent=11 // pred_region
        _
      $region24: #{tpu_custom_call.1} parent=11 // pred_fallthru
        _
    $region12: #{tpu_custom_call.1} parent=5 // pred_fallthru
      _
    %p166 = scmp.lt.s32.totalorder %s11, 2
    // Predicated region
    $region25: #{tpu_custom_call.1} parent=5 // pred_check
      %p167 = pneg %p166
    $region26: #{tpu_custom_call.1} parent=5 // pred_check_branch
      %169 = sbr.rel (%p167) target = $region28
    $region27: #{tpu_custom_call.1} parent=5 // pred_region
      // Predicated region
      $region29: #{tpu_custom_call.1} parent=27 // pred_check
        %p170 = pneg %p66
      $region30: #{tpu_custom_call.1} parent=27 // pred_check_branch
        %172 = sbr.rel (%p170) target = $region32
      $region31: #{tpu_custom_call.1} parent=27 // pred_region
        %p173 = scmp.lt.s32.totalorder %s18, 1
        %s174 = scalar_select %p173, %s18, 1
        %p175 = scmp.lt.s32.totalorder %s19, 0
        %s176 = scalar_select %p175, %s19, 0
        %s177 = smul.addr %s174, 4
        %s178 = sadd.s32 %s176, %s177
        %s179 = smul.addr %s178, 8
        %s180 = scalar_lea.vmem %s1, %s179
      $region32: #{tpu_custom_call.1} parent=27 // pred_fallthru
        _
    $region28: #{tpu_custom_call.1} parent=5 // pred_fallthru
      _
    %p181 = scmp.le.s32.totalorder 1, %s11
    %p182 = scmp.lt.s32.totalorder %s11, 3
    %p183 = pnand %p181, %p182
    %p184 = pneg %p183
    // Predicated region
    $region33: #{tpu_custom_call.1} parent=5 // pred_check
      _
    $region34: #{tpu_custom_call.1} parent=5 // pred_check_branch
      %186 = sbr.rel (%p183) target = $region36
    $region35: #{tpu_custom_call.1} parent=5 // pred_region
      %s187 = ssub.s32 %s11, 1
      %p188 = pneg %p44
      %p189 = pneg %p41
      %p190 = scmp.lt.s32.totalorder %s20, 1
      %s191 = scalar_select %p190, %s20, 1
      %p192 = scmp.lt.s32.totalorder %s21, 0
      %s193 = scalar_select %p192, %s21, 0
      %s194 = smul.addr %s191, 4
      %s195 = sadd.s32 %s193, %s194
      %s196 = smul.addr %s195, 8
      %s197 = scalar_lea.vmem %s1, %s196
      %p198 = pneg %p72
      %p199 = pneg %p69
      %p200 = pneg %p93
      %p201 = pneg %p90
      %p202 = pneg %p114
      %p203 = pneg %p111
      %p204 = pneg %p142
      %p205 = pneg %p139
      %p206 = scmp.lt.s32.totalorder %s20, 1
      %s207 = scalar_select %p206, %s20, 1
      %p208 = scmp.lt.s32.totalorder %s21, 0
      %s209 = scalar_select %p208, %s21, 0
      %s210 = smul.addr %s207, 4
      %s211 = sadd.s32 %s209, %s210
      %s212 = smul.addr %s211, 8
      %s213 = scalar_lea.vmem %s4, %s212
      %p214 = scmp.lt.s32.totalorder %s20, 1
      %s215 = scalar_select %p214, %s20, 1
      %p216 = scmp.lt.s32.totalorder %s21, 0
      %s217 = scalar_select %p216, %s21, 0
      %s218 = smul.addr %s215, 4
      %s219 = sadd.s32 %s217, %s218
      %s220 = smul.addr %s219, 8
      %s221 = scalar_lea.vmem %s1, %s220
      %p222 = scmp.lt.s32.totalorder %s20, 1
      %s223 = scalar_select %p222, %s20, 1
      %p224 = scmp.lt.s32.totalorder %s21, 0
      %s225 = scalar_select %p224, %s21, 0
      %s226 = smul.addr %s223, 4
      %s227 = sadd.s32 %s225, %s226
      %s228 = smul.addr %s227, 8
      %s229 = scalar_lea.vmem %s4, %s228
      %v230 = vld [vmem:[%s221] sm:$0xff]
      %v231 = vld [vmem:[%s221 + $0x8] sm:$0xff]
      %v232 = vld [vmem:[%s221 + $0x10] sm:$0xff]
      %v233 = vld [vmem:[%s221 + $0x18] sm:$0xff]
      %vm234 = vcmask 130048
      %v235 = vsel %vm234, %v230, 0.0
      %v236 = vsel %vm234, %v231, 0.0
      %v237 = vadd.f32 %v235, %v236
      %v238 = vsel %vm234, %v232, 0.0
      %v239 = vadd.f32 %v237, %v238
      %v240 = vsel %vm234, %v233, 0.0
      %v241 = vadd.f32 %v239, %v240
      %v242 = vrot.slane %v241, 4
      %v243 = vadd.f32 %v241, %v242
      %v244 = vrot.slane %v243, 2
      %v245 = vadd.f32 %v243, %v244
      %v246 = vrot.slane %v245, 1
      %v247 = vadd.f32 %v245, %v246
      %v248 = vrcp.pop 32.0
      %v249 = vmul.f32 32.0, %v248
      %v250 = vsub.f32 1.0, %v249
      %v251 = vmul.f32 %v248, %v250
      %v252 = vadd.f32 %v248, %v251
      %vm253 = vweird.f32 %v248
      %v254 = vsel %vm253, %v248, %v252
      %v255 = vmul.f32 %v247, %v254
      %v256 = vsub.f32 %v230, %v255
      %v257 = vsub.f32 %v231, %v255
      %v258 = vsub.f32 %v232, %v255
      %v259 = vsub.f32 %v233, %v255
      %v260 = vmul.f32 %v256, %v256
      %v261 = vmul.f32 %v257, %v257
      %v262 = vmul.f32 %v258, %v258
      %v263 = vmul.f32 %v259, %v259
      %v264 = vsel %vm234, %v260, 0.0
      %v265 = vsel %vm234, %v261, 0.0
      %v266 = vadd.f32 %v264, %v265
      %v267 = vsel %vm234, %v262, 0.0
      %v268 = vadd.f32 %v266, %v267
      %v269 = vsel %vm234, %v263, 0.0
      %v270 = vadd.f32 %v268, %v269
      %v271 = vrot.slane %v270, 4
      %v272 = vadd.f32 %v270, %v271
      %v273 = vrot.slane %v272, 2
      %v274 = vadd.f32 %v272, %v273
      %v275 = vrot.slane %v274, 1
      %v276 = vadd.f32 %v274, %v275
      %v277 = vmul.f32 %v276, %v254
      %v278 = vadd.f32 %v277, 1e-05
      %v279 = vrsqrt.pop %v278
      %v280 = vmul.f32 %v279, %v278
      %v281 = vmul.f32 %v280, %v279
      %v282 = vmul.f32 0.5, %v281
      %v283 = vsub.f32 1.5, %v282
      %v284 = vmul.f32 %v279, %v283
      %vm285 = vweird.f32 %v278
      %vm286 = vweird.f32 %v279
      %vm287 = vmor %vm285, %vm286
      %v288 = vsel %vm287, %v279, %v284
      %v289 = vmul.f32 %v256, %v288
      %v290 = vmul.f32 %v257, %v288
      %v291 = vmul.f32 %v258, %v288
      %v292 = vmul.f32 %v259, %v288
      %v293 = vld [vmem:[%s2] sm:$0xff]
      %v294 = vld [vmem:[%s2 + $0x8] sm:$0xff]
      %v295 = vld [vmem:[%s2 + $0x10] sm:$0xff]
      %v296 = vld [vmem:[%s2 + $0x18] sm:$0xff]
      %298 = vset.pattern.permute.xlu0 0
      %299 = vperm.xlu0 %298, %v293
      %v300 = vpop.permute.xlu0 %299
      %303 = vset.pattern.permute.xlu0 0
      %304 = vperm.xlu0 %303, %v294
      %v305 = vpop.permute.xlu0 %304
      %308 = vset.pattern.permute.xlu0 0
      %309 = vperm.xlu0 %308, %v295
      %v310 = vpop.permute.xlu0 %309
      %313 = vset.pattern.permute.xlu0 0
      %314 = vperm.xlu0 %313, %v296
      %v315 = vpop.permute.xlu0 %314
      %v317 = vmul.f32 %v289, %v300
      %v318 = vmul.f32 %v290, %v305
      %v319 = vmul.f32 %v291, %v310
      %v320 = vmul.f32 %v292, %v315
      %v321 = vld [vmem:[%s3] sm:$0xff]
      %v322 = vld [vmem:[%s3 + $0x8] sm:$0xff]
      %v323 = vld [vmem:[%s3 + $0x10] sm:$0xff]
      %v324 = vld [vmem:[%s3 + $0x18] sm:$0xff]
      %326 = vset.pattern.permute.xlu0 0
      %327 = vperm.xlu0 %326, %v321
      %v328 = vpop.permute.xlu0 %327
      %331 = vset.pattern.permute.xlu0 0
      %332 = vperm.xlu0 %331, %v322
      %v333 = vpop.permute.xlu0 %332
      %336 = vset.pattern.permute.xlu0 0
      %337 = vperm.xlu0 %336, %v323
      %v338 = vpop.permute.xlu0 %337
      %341 = vset.pattern.permute.xlu0 0
      %342 = vperm.xlu0 %341, %v324
      %v343 = vpop.permute.xlu0 %342
      %v345 = vadd.f32 %v317, %v328
      %v346 = vadd.f32 %v318, %v333
      %v347 = vadd.f32 %v319, %v338
      %v348 = vadd.f32 %v320, %v343
      %v349 = vmul.f32 %v345, 0.5
      %v350 = vmul.f32 %v346, 0.5
      %v351 = vmul.f32 %v347, 0.5
      %v352 = vmul.f32 %v348, 0.5
      %v353 = vmul.f32 %v345, 0.70710677
      %v354 = vmul.f32 %v346, 0.70710677
      %v355 = vmul.f32 %v347, 0.70710677
      %v356 = vmul.f32 %v348, 0.70710677
      %v357 = vand.u32 2147483647, %v353
      %v358 = vand.u32 2147483647, %v354
      %v359 = vand.u32 2147483647, %v355
      %v360 = vand.u32 2147483647, %v356
      %v361 = vmul.f32 %v357, 0.3275911
      %v362 = vmul.f32 %v358, 0.3275911
      %v363 = vmul.f32 %v359, 0.3275911
      %v364 = vmul.f32 %v360, 0.3275911
      %v365 = vadd.f32 %v361, 1.0
      %v366 = vadd.f32 %v362, 1.0
      %v367 = vadd.f32 %v363, 1.0
      %v368 = vadd.f32 %v364, 1.0
      %v369 = vrcp.pop %v365
      %v370 = vmul.f32 %v365, %v369
      %v371 = vsub.f32 1.0, %v370
      %v372 = vmul.f32 %v369, %v371
      %v373 = vadd.f32 %v369, %v372
      %vm374 = vweird.f32 %v365
      %vm375 = vweird.f32 %v369
      %vm376 = vmor %vm374, %vm375
      %v377 = vsel %vm376, %v369, %v373
      %v378 = vand.u32 2147483647, %v365
      %vm379 = vcmp.eq.f32.partialorder %v378, 8.507059e+37
      %v380 = vand.u32 %v365, 2147483648
      %v381 = vor.u32 1.1754944e-38, %v380
      %v382 = vsel %vm379, %v381, %v377
      %v383 = vmul.f32 1.0, %v382
      %v384 = vrcp.pop %v366
      %v385 = vmul.f32 %v366, %v384
      %v386 = vsub.f32 1.0, %v385
      %v387 = vmul.f32 %v384, %v386
      %v388 = vadd.f32 %v384, %v387
      %vm389 = vweird.f32 %v366
      %vm390 = vweird.f32 %v384
      %vm391 = vmor %vm389, %vm390
      %v392 = vsel %vm391, %v384, %v388
      %v393 = vand.u32 2147483647, %v366
      %vm394 = vcmp.eq.f32.partialorder %v393, 8.507059e+37
      %v395 = vand.u32 %v366, 2147483648
      %v396 = vor.u32 1.1754944e-38, %v395
      %v397 = vsel %vm394, %v396, %v392
      %v398 = vmul.f32 1.0, %v397
      %v399 = vrcp.pop %v367
      %v400 = vmul.f32 %v367, %v399
      %v401 = vsub.f32 1.0, %v400
      %v402 = vmul.f32 %v399, %v401
      %v403 = vadd.f32 %v399, %v402
      %vm404 = vweird.f32 %v367
      %vm405 = vweird.f32 %v399
      %vm406 = vmor %vm404, %vm405
      %v407 = vsel %vm406, %v399, %v403
      %v408 = vand.u32 2147483647, %v367
      %vm409 = vcmp.eq.f32.partialorder %v408, 8.507059e+37
      %v410 = vand.u32 %v367, 2147483648
      %v411 = vor.u32 1.1754944e-38, %v410
      %v412 = vsel %vm409, %v411, %v407
      %v413 = vmul.f32 1.0, %v412
      %v414 = vrcp.pop %v368
      %v415 = vmul.f32 %v368, %v414
      %v416 = vsub.f32 1.0, %v415
      %v417 = vmul.f32 %v414, %v416
      %v418 = vadd.f32 %v414, %v417
      %vm419 = vweird.f32 %v368
      %vm420 = vweird.f32 %v414
      %vm421 = vmor %vm419, %vm420
      %v422 = vsel %vm421, %v414, %v418
      %v423 = vand.u32 2147483647, %v368
      %vm424 = vcmp.eq.f32.partialorder %v423, 8.507059e+37
      %v425 = vand.u32 %v368, 2147483648
      %v426 = vor.u32 1.1754944e-38, %v425
      %v427 = vsel %vm424, %v426, %v422
      %v428 = vmul.f32 1.0, %v427
      %v429 = vmul.f32 %v383, 1.0614054
      %v430 = vmul.f32 %v398, 1.0614054
      %v431 = vmul.f32 %v413, 1.0614054
      %v432 = vmul.f32 %v428, 1.0614054
      %v433 = vadd.f32 %v429, -1.4531521
      %v434 = vadd.f32 %v430, -1.4531521
      %v435 = vadd.f32 %v431, -1.4531521
      %v436 = vadd.f32 %v432, -1.4531521
      %v437 = vmul.f32 %v433, %v383
      %v438 = vmul.f32 %v434, %v398
      %v439 = vmul.f32 %v435, %v413
      %v440 = vmul.f32 %v436, %v428
      %v441 = vadd.f32 %v437, 1.4214138
      %v442 = vadd.f32 %v438, 1.4214138
      %v443 = vadd.f32 %v439, 1.4214138
      %v444 = vadd.f32 %v440, 1.4214138
      %v445 = vmul.f32 %v441, %v383
      %v446 = vmul.f32 %v442, %v398
      %v447 = vmul.f32 %v443, %v413
      %v448 = vmul.f32 %v444, %v428
      %v449 = vadd.f32 %v445, -0.28449672
      %v450 = vadd.f32 %v446, -0.28449672
      %v451 = vadd.f32 %v447, -0.28449672
      %v452 = vadd.f32 %v448, -0.28449672
      %v453 = vmul.f32 %v449, %v383
      %v454 = vmul.f32 %v450, %v398
      %v455 = vmul.f32 %v451, %v413
      %v456 = vmul.f32 %v452, %v428
      %v457 = vadd.f32 %v453, 0.2548296
      %v458 = vadd.f32 %v454, 0.2548296
      %v459 = vadd.f32 %v455, 0.2548296
      %v460 = vadd.f32 %v456, 0.2548296
      %v461 = vmul.f32 %v457, %v383
      %v462 = vmul.f32 %v458, %v398
      %v463 = vmul.f32 %v459, %v413
      %v464 = vmul.f32 %v460, %v428
      %v465 = vsub.f32 0.0, %v357
      %v466 = vsub.f32 0.0, %v358
      %v467 = vsub.f32 0.0, %v359
      %v468 = vsub.f32 0.0, %v360
      %v469 = vmul.f32 %v465, %v357
      %v470 = vmul.f32 %v466, %v358
      %v471 = vmul.f32 %v467, %v359
      %v472 = vmul.f32 %v468, %v360
      %v473 = vmul.f32 %v469, 1.442695
      %v474 = vpow.pop %v473
      %v475 = vmul.f32 %v470, 1.442695
      %v476 = vpow.pop %v475
      %v477 = vmul.f32 %v471, 1.442695
      %v478 = vpow.pop %v477
      %v479 = vmul.f32 %v472, 1.442695
      %v480 = vpow.pop %v479
      %v481 = vmul.f32 %v461, %v474
      %v482 = vmul.f32 %v462, %v476
      %v483 = vmul.f32 %v463, %v478
      %v484 = vmul.f32 %v464, %v480
      %v485 = vsub.f32 1.0, %v481
      %v486 = vsub.f32 1.0, %v482
      %v487 = vsub.f32 1.0, %v483
      %v488 = vsub.f32 1.0, %v484
      %vm489 = vcmp.ge.f32.partialorder %v353, 0.0
      %vm490 = vcmp.ge.f32.partialorder %v354, 0.0
      %vm491 = vcmp.ge.f32.partialorder %v355, 0.0
      %vm492 = vcmp.ge.f32.partialorder %v356, 0.0
      %v493 = vsub.f32 0.0, %v485
      %v494 = vsub.f32 0.0, %v486
      %v495 = vsub.f32 0.0, %v487
      %v496 = vsub.f32 0.0, %v488
      %v497 = vsel %vm489, %v485, %v493
      %v498 = vsel %vm490, %v486, %v494
      %v499 = vsel %vm491, %v487, %v495
      %v500 = vsel %vm492, %v488, %v496
      %v501 = vadd.f32 %v497, 1.0
      %v502 = vadd.f32 %v498, 1.0
      %v503 = vadd.f32 %v499, 1.0
      %v504 = vadd.f32 %v500, 1.0
      %v505 = vmul.f32 %v349, %v501
      %v506 = vmul.f32 %v350, %v502
      %v507 = vmul.f32 %v351, %v503
      %v508 = vmul.f32 %v352, %v504
      %509 = vst.msk [vmem:[%s229] sm:$0xff] %vm234, %v505
      %510 = vst.msk [vmem:[%s229 + $0x8] sm:$0xff] %vm234, %v506
      %511 = vst.msk [vmem:[%s229 + $0x10] sm:$0xff] %vm234, %v507
      %512 = vst.msk [vmem:[%s229 + $0x18] sm:$0xff] %vm234, %v508
      %p513 = scmp.lt.s32.totalorder %s20, 1
      %s514 = scalar_select %p513, %s20, 1
      %p515 = scmp.lt.s32.totalorder %s21, 0
      %s516 = scalar_select %p515, %s21, 0
      %s517 = smul.addr %s514, 4
      %s518 = sadd.s32 %s516, %s517
      %s519 = smul.addr %s518, 8
      %s520 = scalar_lea.vmem %s4, %s519
      // Predicated region
      $region37: #{tpu_custom_call.1} parent=35 // pred_check
        %p521 = pneg %p139
      $region38: #{tpu_custom_call.1} parent=35 // pred_check_branch
        %523 = sbr.rel (%p521) target = $region40
      $region39: #{tpu_custom_call.1} parent=35 // pred_region
        _
      $region40: #{tpu_custom_call.1} parent=35 // pred_fallthru
        _
    $region36: #{tpu_custom_call.1} parent=5 // pred_fallthru
      _
    %p524 = scmp.le.s32.totalorder 2, %s11
    // Predicated region
    $region41: #{tpu_custom_call.1} parent=5 // pred_check
      %p525 = pneg %p524
    $region42: #{tpu_custom_call.1} parent=5 // pred_check_branch
      %527 = sbr.rel (%p525) target = $region44
    $region43: #{tpu_custom_call.1} parent=5 // pred_region
      %s528 = ssub.s32 %s11, 2
      // Predicated region
      $region45: #{tpu_custom_call.1} parent=43 // pred_check
        %p529 = pneg %p145
      $region46: #{tpu_custom_call.1} parent=43 // pred_check_branch
        %531 = sbr.rel (%p529) target = $region48
      $region47: #{tpu_custom_call.1} parent=43 // pred_region
        %p532 = scmp.lt.s32.totalorder %s22, 1
        %s533 = scalar_select %p532, %s22, 1
        %p534 = scmp.lt.s32.totalorder %s23, 0
        %s535 = scalar_select %p534, %s23, 0
        %s536 = smul.addr %s533, 4
        %s537 = sadd.s32 %s535, %s536
        %s538 = smul.addr %s537, 8
        %s539 = scalar_lea.vmem %s4, %s538
      $region48: #{tpu_custom_call.1} parent=43 // pred_fallthru
        _
    $region44: #{tpu_custom_call.1} parent=5 // pred_fallthru
      _
  $region6: #{tpu_custom_call.1} parent=0 // loop_footer
    %s15 = sadd.s32 1, %s11
  $region7: #{tpu_custom_call.1} parent=0 // loop_footer_branch
    %10 = sbr.rel target = $region3
  $region8: #{tpu_custom_call.1} parent=0 // loop_exit
    _

</llo_original>
